<compile_context>
chip_gen: v6e
topology: v6e:2x2x1
jax: 0.10.0
libtpu: 0.0.40
codegen_flags: <defaults>
</compile_context>

<pallas_src>
import functools

import jax
import jax.numpy as jnp
from jax.experimental import pallas as pl
from jax.experimental.pallas import tpu as pltpu

_LANES = 128      # vreg lane width
_SUBLANES = 8     # vreg sublane count (32-bit)


def _round_up(v, m):
    return -(-v // m) * m


def _point_max_kernel(x_ref, o_ref, acc_ref, *, tn, num_k, n_valid_last, neg_fill):
    """x_ref: (tm, tn) input tile. o_ref: (tm, 1). acc_ref: (tm, 128) VMEM scratch."""
    k = pl.program_id(1)
    tm = x_ref.shape[0]
    slabs = tn // _LANES
    neg = jnp.asarray(neg_fill, dtype=x_ref.dtype)

    def tile_max(n_valid):
        """Max over the first `n_valid` columns of this tile -> (tm, 128).

        Pure register reduction (elementwise VPU maxes): slabs fully past
        `n_valid` are never read, the single straddling slab is masked against
        a *static* threshold, and two partial accumulators give a little ILP
        without blowing the vreg budget.  acc_ref is NOT touched here.
        """
        parts = [None, None]
        cnt = 0
        for g in range(slabs):
            thr = n_valid - g * _LANES            # static Python int
            if thr <= 0:                          # slab entirely past N: skip it
                break
            xg = x_ref[:, g * _LANES:(g + 1) * _LANES]
            if thr < _LANES:                      # straddles N: mask padded lanes
                lane = jax.lax.broadcasted_iota(jnp.int32, (tm, _LANES), 1)
                xg = jnp.where(lane < thr, xg, neg)
            p = cnt & 1
            parts[p] = xg if parts[p] is None else jnp.maximum(parts[p], xg)
            cnt += 1
        if parts[1] is None:
            return parts[0]
        return jnp.maximum(parts[0], parts[1])

    if num_k == 1:
        # Single reduction step: no accumulator round-trip at all.
        o_ref[...] = jnp.max(tile_max(n_valid_last), axis=-1,
                             keepdims=True).astype(o_ref.dtype)
        return

    @pl.when(k == 0)
    def _first():                                  # first tile is always full
        acc_ref[...] = tile_max(tn)

    if num_k > 2:
        @pl.when(jnp.logical_and(k > 0, k < num_k - 1))
        def _mid():                                # full tiles: unmasked fast path
            acc_ref[...] = jnp.maximum(acc_ref[...], tile_max(tn))

    @pl.when(k == num_k - 1)
    def _last():
        m = jnp.maximum(acc_ref[...], tile_max(n_valid_last))
        # One deferred cross-lane (XLU) reduce per row block.
        o_ref[...] = jnp.max(m, axis=-1, keepdims=True).astype(o_ref.dtype)


def _vmem_policy():
    """Generation-aware (per-tile input budget, vmem_limit cap, want >=2 row blocks)."""
    cap = None
    try:
        cap = getattr(pltpu.get_tpu_info(), "vmem_capacity_bytes", None)
    except Exception:
        cap = None
    if cap is None:
        try:
            kind = jax.devices()[0].device_kind.lower()
        except Exception:
            kind = ""
        cap = (64 << 20) if "v7" in kind else (128 << 20)
    if cap >= (100 << 20):
        # v5e / v6e: 128 MiB VMEM, one TensorCore per chip.
        return 24 << 20, 64 << 20, False
    # v7x: 64 MiB VMEM per TensorCore, two TensorCores per chip.
    return 12 << 20, 36 << 20, True


def _choose_tiles(M, N, itemsize, tile_budget, want_two_row_blocks, tm=None, tn=None):
    n_pad = _round_up(N, _LANES)
    m_pad = _round_up(M, _SUBLANES)

    if tn is None:
        # As wide as possible: amortizes grid-step overhead and lengthens the
        # contiguous HBM chunk per row (tn * itemsize).  Capped so the unrolled
        # slab loop stays small and an 8-row tile still fits the budget.
        cap_tn = max(_LANES, min(16384, 32768 // max(itemsize, 1)))
        max_tn = (tile_budget // (_SUBLANES * itemsize)) // _LANES * _LANES
        tn = max(_LANES, min(n_pad, cap_tn, max_tn))
    else:
        tn = max(_LANES, min(_round_up(tn, _LANES), n_pad))

    if tm is None:
        # Tall enough that a tile is a few MiB, short enough that the (tm,128)
        # running max (tm/8 vregs) stays register resident without spilling.
        max_tm = (tile_budget // (tn * itemsize)) // _SUBLANES * _SUBLANES
        tm = max(_SUBLANES, min(m_pad, max_tm, 128))
        # v7x: >= 2 blocks on the "parallel" row axis so both TensorCores run.
        if want_two_row_blocks and m_pad >= 2 * _SUBLANES and pl.cdiv(m_pad, tm) < 2:
            tm = max(_SUBLANES, (m_pad // 2) // _SUBLANES * _SUBLANES)
    else:
        tm = max(_SUBLANES, min(_round_up(tm, _SUBLANES), m_pad))

    return tm, tn


def point_max_pool(x, *, tm=None, tn=None):
    """Max over the last axis of (B, C, N) -> (B, C). Matches PointMaxPool.forward."""
    B, C, N = x.shape
    M = B * C
    itemsize = jnp.dtype(x.dtype).itemsize

    tile_budget, vmem_cap, want_two = _vmem_policy()
    tm, tn = _choose_tiles(M, N, itemsize, tile_budget, want_two, tm=tm, tn=tn)
    grid_m = pl.cdiv(M, tm)
    num_k = pl.cdiv(N, tn)
    n_valid_last = N - (num_k - 1) * tn

    if jnp.issubdtype(x.dtype, jnp.floating):
        neg_fill = float("-inf")
    else:
        neg_fill = int(jnp.iinfo(x.dtype).min)

    kernel = functools.partial(
        _point_max_kernel,
        tn=tn, num_k=num_k, n_valid_last=n_valid_last, neg_fill=neg_fill)

    # Just enough VMEM for the double-buffered input tiles + scratch, capped
    # per generation (smaller request on v7x's 64 MiB-per-core parts).
    vmem_need = 2 * tm * tn * itemsize + tm * _LANES * itemsize + (4 << 20)
    vmem_limit = int(min(max(vmem_need, 16 << 20), vmem_cap))

    x2d = x.reshape(M, N)
    # NOTE: pipeline_mode=pl.Buffered(3) on the input BlockSpec could further
    # hide DMA issue latency for very small tiles on v7x; left at the default
    # double-buffering for portability across jax versions.
    out2d = pl.pallas_call(
        kernel,
        out_shape=jax.ShapeDtypeStruct((M, 1), x.dtype),
        grid_spec=pltpu.PrefetchScalarGridSpec(
            num_scalar_prefetch=0,
            grid=(grid_m, num_k),
            in_specs=[pl.BlockSpec((tm, tn), lambda i, k: (i, k))],
            out_specs=pl.BlockSpec((tm, 1), lambda i, k: (i, 0)),
            scratch_shapes=[pltpu.VMEM((tm, _LANES), x.dtype)],
        ),
        compiler_params=pltpu.CompilerParams(
            dimension_semantics=("parallel", "arbitrary"),
            vmem_limit_bytes=vmem_limit,
        ),
        cost_estimate=pl.CostEstimate(
            flops=M * N,
            transcendentals=0,
            bytes_accessed=M * N * itemsize + M * itemsize,
        ),
    )(x2d)
    return out2d.reshape(B, C)


if __name__ == "__main__":
    key = jax.random.PRNGKey(0)

    # Small deterministic example consistent with PointNet usage: (B, C, N).
    B, C, N = 2, 8, 256
    x = jax.random.normal(key, (B, C, N), dtype=jnp.float32)
    out = jax.block_until_ready(point_max_pool(x))
    ref = jnp.max(x, axis=2)
    assert out.shape == (B, C), out.shape
    assert jnp.allclose(out, ref), "mismatch vs reference"

    # Ragged N (N % 128 != 0): masked, single-step fast path.
    x2 = jax.random.normal(jax.random.PRNGKey(1), (2, 8, 200), dtype=jnp.float32)
    out2 = jax.block_until_ready(point_max_pool(x2))
    assert jnp.allclose(out2, jnp.max(x2, axis=2)), "mismatch (ragged N)"

    # Multi-step reduction path (num_k > 1, ragged last tile) via a forced tn.
    x3 = jax.random.normal(jax.random.PRNGKey(2), (2, 4, 520), dtype=jnp.float32)
    out3 = jax.block_until_ready(point_max_pool(x3, tn=128))
    assert jnp.allclose(out3, jnp.max(x3, axis=2)), "mismatch (multi-step)"

    # Tiny-C case (raw xyz): padded sublane rows must not leak into the output.
    x4 = jax.random.normal(jax.random.PRNGKey(3), (1, 3, 300), dtype=jnp.float32)
    out4 = jax.block_until_ready(point_max_pool(x4))
    assert jnp.allclose(out4, jnp.max(x4, axis=2)), "mismatch (tiny C)"

    print("KERNEL_OK")
</pallas_src>

<mosaic_0001>
module attributes {stable_mosaic.version = 11 : i64} {
  func.func @_point_max_kernel(%arg0: i32, %arg1: i32, %arg2: memref<16x256xf32, #tpu.memory_space<vmem>>, %arg3: memref<16x1xf32, #tpu.memory_space<vmem>>, %arg4: memref<16x128xf32, #tpu.memory_space<vmem>>) attributes {dimension_semantics = [#tpu.dimension_semantics<parallel>, #tpu.dimension_semantics<arbitrary>], iteration_bounds = array<i64: 1, 1>, scalar_prefetch = 0 : i64, scratch_operands = 1 : i64, tpu.core_type = #tpu.core_type<tc>, window_params = [{transform_indices = @transform_0, window_bounds = array<i64: 16, 256>}, {transform_indices = @transform_1, window_bounds = array<i64: 16, 1>}]} {
    %c0 = arith.constant 0 : index
    %c0_0 = arith.constant 0 : index
    %0 = vector.load %arg2[%c0, %c0_0] : memref<16x256xf32, #tpu.memory_space<vmem>>, vector<16x128xf32>
    %c0_1 = arith.constant 0 : index
    %c128 = arith.constant 128 : index
    %1 = vector.load %arg2[%c0_1, %c128] : memref<16x256xf32, #tpu.memory_space<vmem>>, vector<16x128xf32>
    %2 = arith.maximumf %0, %1 : vector<16x128xf32>
    %cst = arith.constant dense<0xFF800000> : vector<16xf32>
    %3 = vector.multi_reduction <maximumf>, %2, %cst [1] : vector<16x128xf32> to vector<16xf32>
    %4 = vector.shape_cast %3 : vector<16xf32> to vector<16x1xf32>
    %c0_2 = arith.constant 0 : index
    %c0_3 = arith.constant 0 : index
    %5 = vector.load %arg3[%c0_2, %c0_3] : memref<16x1xf32, #tpu.memory_space<vmem>>, vector<16x1xf32>
    tpu.vector_store %arg3[%c0_2, %c0_3], %4 {strides = array<i32>} : memref<16x1xf32, #tpu.memory_space<vmem>>, vector<16x1xf32>,
    return
  }
  func.func @transform_0(%arg0: i32, %arg1: i32) -> (i32, i32) {
    %c0_i32 = arith.constant 0 : i32
    return %arg0, %arg1 : i32, i32
  }
  func.func @transform_1(%arg0: i32, %arg1: i32) -> (i32, i32) {
    %c0_i32 = arith.constant 0 : i32
    %c0_i32_0 = arith.constant 0 : i32
    return %arg0, %c0_i32 : i32, i32
  }
}

</mosaic_0001>

<llo_original>
// kernel: tpu_custom_call.1
$region0: #{tpu_custom_call.1}
  #allocation0 [shape = 'u32[]', space=smem, size = 0x4, offset = 0x4, fixed_abs, tag = 'smem constant byte address 0x4 - core index']
  #allocation1 [shape = 'u32[144,128]{1,0:T(1,128)}', space=vmem, size = 0x12000, scoped, tag = 'internal scratch']
  #allocation2 [shape = 'f32[16,128]{1,0:T(8,128)}', space=vmem, size = 0x2000, scoped, tag = 'scratch operand']
  %s0 = inlined_call_operand.hbm [shape: f32[16,256], index: 0, kind: input, shape index: {}]
  %s1 = inlined_call_operand.vmem [shape: f32[16,1], index: 1, kind: output, shape index: {}]
  %s2 = sld [smem:[#allocation0]]
  $region18: #{tpu_custom_call.1} parent=0
    _
  %s4 = ssub.s32 1, %s2
  %s5 = scalar_select 0, %s4, %s2
  $region1: #{tpu_custom_call.1} parent=0
    #allocation3 [shape = 'u8[16384]{0}', space=vmem, size = 0x4000, scoped, tag = 'input window, operand 0, single buffered']
    #allocation4 [shape = 's32[1]{0}', space=sflag, size = 0x4, scoped, tag = 'scoped memory for tpu_custom_call.1']
    %6 = vsyncpa [#allocation4], 0
    // Predicated region
    $region2: #{tpu_custom_call.1} parent=1 // pred_check
      _
    $region3: #{tpu_custom_call.1} parent=1 // pred_check_branch
      %8 = sbr.rel (0) target = $region5
    $region4: #{tpu_custom_call.1} parent=1 // pred_region
      %s10 = ssub.s32 512, 512
      %11 = vsyncadd [#allocation4], %s10
      %s12 = sshll.u32 [#allocation3], 4
      %s13 = int_to_ptr.vmem [resolvable:$true] %s12
      %18 = dma.hbm_to_vmem [thread:$0]  %s0, 512, %s13, [#allocation4], 256, 256, 16
    $region5: #{tpu_custom_call.1} parent=1 // pred_fallthru
      _
    // Predicated region
    $region6: #{tpu_custom_call.1} parent=1 // pred_check
      _
    $region7: #{tpu_custom_call.1} parent=1 // pred_check_branch
      %20 = sbr.rel (0) target = $region9
    $region8: #{tpu_custom_call.1} parent=1 // pred_region
      %21 = dma.done [#allocation4], 512
    $region9: #{tpu_custom_call.1} parent=1 // pred_fallthru
      _
    %v22 = vld [vmem:[#allocation3] sm:$0xff]
    %v23 = vld [vmem:[#allocation3 + $0x10] sm:$0xff]
    %v24 = vld [vmem:[#allocation3 + $0x8] sm:$0xff]
    %v25 = vld [vmem:[#allocation3 + $0x18] sm:$0xff]
    %v26 = vmax.f32 %v22, %v24
    %v27 = vmax.f32 %v23, %v25
    %28 = vmax.xlane.f32.xlu0 %v26
    %v29 = vpop.xlane.xlu0 %28
    %30 = vmax.xlane.f32.xlu0 %v27
    %v31 = vpop.xlane.xlu0 %30
    %vm32 = vcmask 7168
    %33 = vst.msk [vmem:[%s1] sm:$0xff] %vm32, %v29
    %34 = vst.msk [vmem:[%s1 + $0x8] sm:$0xff] %vm32, %v31
    // Predicated region
    $region10: #{tpu_custom_call.1} parent=1 // pred_check
      _
    $region11: #{tpu_custom_call.1} parent=1 // pred_check_branch
      %36 = sbr.rel (0) target = $region13
    $region12: #{tpu_custom_call.1} parent=1 // pred_region
      _
    $region13: #{tpu_custom_call.1} parent=1 // pred_fallthru
      _
    // Predicated region
    $region14: #{tpu_custom_call.1} parent=1 // pred_check
      _
    $region15: #{tpu_custom_call.1} parent=1 // pred_check_branch
      %38 = sbr.rel (0) target = $region17
    $region16: #{tpu_custom_call.1} parent=1 // pred_region
      _
    $region17: #{tpu_custom_call.1} parent=1 // pred_fallthru
      _
    %39 = vsyncpa [#allocation4], 1

</llo_original>
